<compile_context>
chip_gen: v7x
topology: tpu7x:2x2x1
jax: 0.10.0
libtpu: 0.0.40
codegen_flags: <defaults>
</compile_context>

<pallas_src>
import functools

import jax
import jax.numpy as jnp
from jax.experimental import pallas as pl
from jax.experimental.pallas import tpu as pltpu

_SUBLANE = 8
_LANE = 128


def _round_up(x, m):
    return (x + m - 1) // m * m


def _vmem_limit_bytes():
    """~3/4 of physical VMEM for the current TPU generation (v5e/v6e: 128 MiB
    -> 96 MiB, v7x: 64 MiB -> 48 MiB), with a conservative fallback."""
    try:
        cap = int(getattr(pltpu.get_tpu_info(), "vmem_capacity_bytes"))
    except Exception:
        cap = 64 * 1024 * 1024
    return max(32 * 1024 * 1024, (cap * 3) // 4)


# ------------------------------------------------------------------ kernel --

def _make_block_kernel(*, n_layers, t_tile, halo, win, seq_len, d_out_pads,
                       out_dtype):
    """Fused N x (Conv1d k=3 + ReLU) on one (batch, time-tile) grid step."""

    def kernel(x_hbm, *refs):
        # refs = [w0, b0, w1, b1, ..., out_ref, xbuf, sem]
        out_ref = refs[2 * n_layers]
        xbuf = refs[2 * n_layers + 1]
        sem = refs[2 * n_layers + 2]

        b = pl.program_id(0)
        i = pl.program_id(1)
        n_t = pl.num_programs(1)
        slot = i % 2

        def fetch(t_idx, s):
            pltpu.make_async_copy(
                x_hbm.at[b, pl.ds(t_idx * t_tile, win), :],
                xbuf.at[s],
                sem.at[s],
            ).start()

        # Prime the input pipeline at the start of each batch row (safe when
        # the batch axis is megacore-"parallel": every b starts at i == 0).
        @pl.when(i == 0)
        def _():
            fetch(0, 0)

        # Prefetch the next time tile of this batch row into the other slot.
        @pl.when(i + 1 < n_t)
        def _():
            fetch(i + 1, 1 - slot)

        # Wait for the current haloed window.
        pltpu.make_async_copy(
            x_hbm.at[0, pl.ds(0, win), :], xbuf.at[slot], sem.at[slot]
        ).wait()

        # (win, 1) true-sequence-range mask, built ONCE and reused per layer.
        # It implements the conv's zero padding at the real sequence edges and
        # keeps out-of-range halo rows at exactly zero between fused layers.
        row = jax.lax.broadcasted_iota(jnp.int32, (win, 1), 0)
        t_glob = i * t_tile + row - halo
        valid = jnp.logical_and(t_glob >= 0, t_glob < seq_len)

        h = xbuf[slot]                                   # (win, Din_pad) bf16
        for layer in range(n_layers):
            w_all = refs[2 * layer][...]                 # (Din_pad, 3*Dout_pad) bf16
            bias = refs[2 * layer + 1][...]              # (1, Dout_pad) f32
            d_out = d_out_pads[layer]

            # One packed MXU matmul for all 3 taps; f32 accumulation.
            z = jnp.dot(h, w_all, preferred_element_type=jnp.float32)
            z_prev = z[:, 0 * d_out:1 * d_out]           # tap k=0 -> needs x[t-1]
            z_cur = z[:, 1 * d_out:2 * d_out]            # tap k=1 -> x[t]
            z_next = z[:, 2 * d_out:3 * d_out]           # tap k=2 -> needs x[t+1]

            # Shift results along time (XLU rolls). The circular wrap only
            # corrupts window rows 0 / win-1, which lie in the discarded halo.
            y = (pltpu.roll(z_prev, shift=1, axis=0) + z_cur
                 + pltpu.roll(z_next, shift=win - 1, axis=0) + bias)
            h = jnp.where(valid, jnp.maximum(y, 0.0), 0.0)
            if layer + 1 < n_layers:
                h = h.astype(jnp.bfloat16)               # bf16 operands, f32 accum

        # Store only the tile's center rows. `halo` is a multiple of 8 so the
        # slice stays sublane-aligned; the last dim is a 128-multiple, so the
        # output stores are dense (no masked vst).
        out_ref[0] = h[halo:halo + t_tile, :].astype(out_dtype)

    return kernel


# ------------------------------------------------------------ param packing --

def pack_block_params(params, n_features):
    """Pre-pack Conv1d(k=3) params ONCE, outside the per-call jit.

    Each (w, b) with w: (3, Din, Dout), b: (1, Dout) becomes
      w_all: (Din_pad, 3*Dout_pad) bf16  (taps packed along the lane axis),
      bias : (1, Dout_pad)         f32,
    with feature dims zero-padded to multiples of 128. Padded channels stay
    exactly zero through every ReLU layer, so numerics are unchanged.
    """
    packed = []
    d_in = n_features
    for (w, bias) in params:
        d_out = w.shape[2]
        d_in_p = _round_up(d_in, _LANE)
        d_out_p = _round_up(d_out, _LANE)
        w_p = jnp.zeros((3, d_in_p, d_out_p), jnp.float32)
        w_p = w_p.at[:, :d_in, :d_out].set(w)
        w_all = jnp.transpose(w_p, (1, 0, 2)).reshape(d_in_p, 3 * d_out_p)
        b_p = jnp.zeros((1, d_out_p), jnp.float32).at[:, :d_out].set(bias)
        packed.append((w_all.astype(jnp.bfloat16), b_p))
        d_in = d_out
    return packed


# ------------------------------------------------------------ pallas caller --

def block_forward(packed_params, x_bct, *, d_out, t_tile=None,
                  out_dtype=jnp.float32):
    """Block.forward. x_bct: (B, n_features, T) f32 (PyTorch NCL layout).

    `packed_params` comes from pack_block_params; `d_out` is the (unpadded)
    channel count of the last layer. Returns (B, d_out, T) in `out_dtype`.
    """
    B, d_in0, T = x_bct.shape
    n_layers = len(packed_params)
    d_in_p = packed_params[0][0].shape[0]
    d_out_pads = [w.shape[1] // 3 for (w, _) in packed_params]
    d_last_p = d_out_pads[-1]

    # Time tiling: halo of n_layers rows per side, rounded to the sublane so
    # the center-slice and DMA windows stay 8-row aligned.
    halo = _round_up(n_layers, _SUBLANE)
    if t_tile is None:
        # Budget the dominant per-step VMEM term (the (win, 3*Dout_pad) f32
        # matmul result) against the per-generation VMEM limit.
        budget = _vmem_limit_bytes() // 8
        rows = budget // (3 * max(d_out_pads) * 4)
        t_tile = max(_SUBLANE, min(256, (rows // _SUBLANE) * _SUBLANE))
    t_tile = max(_SUBLANE,
                 min(_round_up(t_tile, _SUBLANE), _round_up(T, _SUBLANE)))
    n_t = pl.cdiv(T, t_tile)
    t_total = n_t * t_tile
    win = t_tile + 2 * halo

    # Lane-dense, time-major layout for the kernel; bf16 MXU operands.
    # TODO(synk): fold this transpose/pad into the kernel (pltpu.einshape on
    # the VMEM tile) to also remove the input/output HBM relayout passes.
    x_btd = jnp.transpose(x_bct, (0, 2, 1)).astype(jnp.bfloat16)   # (B, T, Din)
    x_pad = jnp.pad(x_btd, ((0, 0),
                            (halo, t_total - T + halo),
                            (0, d_in_p - d_in0)))                  # (B, Tp, Din_pad)

    in_specs = [pl.BlockSpec(memory_space=pl.ANY)]                 # manual halo DMA
    args = [x_pad]
    for (w_all, b_p) in packed_params:
        # Constant block index across the whole grid -> single-buffer.
        in_specs.append(pl.BlockSpec(w_all.shape, lambda b, i: (0, 0),
                                     pipeline_mode=pl.Buffered(1)))
        in_specs.append(pl.BlockSpec(b_p.shape, lambda b, i: (0, 0),
                                     pipeline_mode=pl.Buffered(1)))
        args += [w_all, b_p]

    kernel = _make_block_kernel(
        n_layers=n_layers, t_tile=t_tile, halo=halo, win=win, seq_len=T,
        d_out_pads=d_out_pads, out_dtype=out_dtype)

    out = pl.pallas_call(
        kernel,
        out_shape=jax.ShapeDtypeStruct((B, t_total, d_last_p), out_dtype),
        grid=(B, n_t),
        in_specs=in_specs,
        out_specs=pl.BlockSpec((1, t_tile, d_last_p), lambda b, i: (b, i, 0)),
        scratch_shapes=[
            pltpu.VMEM((2, win, d_in_p), jnp.bfloat16),   # double-buffered input window
            pltpu.SemaphoreType.DMA((2,)),
        ],
        compiler_params=pltpu.CompilerParams(
            dimension_semantics=("parallel", "arbitrary"),
            vmem_limit_bytes=_vmem_limit_bytes(),
        ),
    )(*args)

    y = out[:, :T, :d_out]                               # drop time/channel padding
    return jnp.transpose(y, (0, 2, 1))                   # back to (B, Cout, T)


# ---------------------------------------------------------------- reference --

def block_reference(params, x_bct):
    """Pure-JAX reference with the same bf16-operand / f32-accum numerics."""
    h = jnp.transpose(x_bct, (0, 2, 1))                  # (B, T, D)
    for (w, bias) in params:
        hb = h.astype(jnp.bfloat16)
        wb = w.astype(jnp.bfloat16)                      # (3, Din, Dout)
        prev = jnp.pad(hb, ((0, 0), (1, 0), (0, 0)))[:, :-1, :]
        nxt = jnp.pad(hb, ((0, 0), (0, 1), (0, 0)))[:, 1:, :]
        y = (jnp.einsum("btd,de->bte", prev, wb[0], preferred_element_type=jnp.float32)
             + jnp.einsum("btd,de->bte", hb, wb[1], preferred_element_type=jnp.float32)
             + jnp.einsum("btd,de->bte", nxt, wb[2], preferred_element_type=jnp.float32)
             + bias)
        h = jnp.maximum(y, 0.0)
    return jnp.transpose(h, (0, 2, 1))


# --------------------------------------------------------------- parameters --

def init_block_params(key, n_features, dims):
    """Conv1d(k=3) weights as (3, Din, Dout) + bias (1, Dout), torch-style init."""
    params = []
    d_in = n_features
    for d_out in dims:
        key, kw, kb = jax.random.split(key, 3)
        bound = 1.0 / float(d_in * 3) ** 0.5
        w = jax.random.uniform(kw, (3, d_in, d_out), jnp.float32, -bound, bound)
        b = jax.random.uniform(kb, (1, d_out), jnp.float32, -bound, bound)
        params.append((w, b))
        d_in = d_out
    return params


# --------------------------------------------------------------------- main --

if __name__ == "__main__":
    B, n_features, T = 2, 32, 32
    dims = [32, 32]                                      # Block(n_features, [D, D])

    key = jax.random.PRNGKey(0)
    k_param, k_input = jax.random.split(key)

    params = init_block_params(k_param, n_features, dims)
    x = jax.random.normal(k_input, (B, n_features, T), dtype=jnp.float32)

    # Pre-pack weights once, outside the per-call jit.
    packed = jax.block_until_ready(pack_block_params(params, n_features))

    fwd = jax.jit(functools.partial(block_forward, d_out=dims[-1]))
    y = jax.block_until_ready(fwd(packed, x))

    assert y.shape == (B, dims[-1], T), y.shape

    y_ref = block_reference(params, x)
    max_err = float(jnp.max(jnp.abs(y - y_ref)))
    assert max_err < 1e-2, f"max abs err {max_err}"

    print("KERNEL_OK")
</pallas_src>

<mosaic_0001>
module attributes {stable_mosaic.version = 11 : i64} {
  func.func @kernel(%arg0: i32, %arg1: i32, %arg2: memref<2x48x128xbf16, #tpu.memory_space<any>>, %arg3: memref<128x384xbf16, #tpu.memory_space<vmem>>, %arg4: memref<1x128xf32, #tpu.memory_space<vmem>>, %arg5: memref<128x384xbf16, #tpu.memory_space<vmem>>, %arg6: memref<1x128xf32, #tpu.memory_space<vmem>>, %arg7: memref<1x32x128xf32, #tpu.memory_space<vmem>>, %arg8: memref<2x48x128xbf16, #tpu.memory_space<vmem>>, %arg9: memref<2x!tpu.dma_semaphore, #tpu.memory_space<semaphore_mem>>) attributes {dimension_semantics = [#tpu.dimension_semantics<parallel>, #tpu.dimension_semantics<arbitrary>], iteration_bounds = array<i64: 2, 1>, scalar_prefetch = 0 : i64, scratch_operands = 2 : i64, tpu.core_type = #tpu.core_type<tc>, window_params = [{}, {pipeline_mode = #tpu.pipeline_mode<synchronous>, transform_indices = @transform_1, window_bounds = array<i64: 128, 384>}, {pipeline_mode = #tpu.pipeline_mode<synchronous>, transform_indices = @transform_2, window_bounds = array<i64: 1, 128>}, {pipeline_mode = #tpu.pipeline_mode<synchronous>, transform_indices = @transform_3, window_bounds = array<i64: 128, 384>}, {pipeline_mode = #tpu.pipeline_mode<synchronous>, transform_indices = @transform_4, window_bounds = array<i64: 1, 128>}, {transform_indices = @transform_5, window_bounds = array<i64: 1, 32, 128>}]} {
    %c2_i32 = arith.constant 2 : i32
    %c0_i32 = arith.constant 0 : i32
    %0 = arith.cmpi eq, %c2_i32, %c0_i32 : i32
    %c1_i32 = arith.constant 1 : i32
    %1 = arith.select %0, %c1_i32, %c2_i32 : i32
    %2 = arith.remsi %arg1, %1 : i32
    %c0_i32_0 = arith.constant 0 : i32
    %3 = arith.cmpi ne, %2, %c0_i32_0 : i32
    %c0_i32_1 = arith.constant 0 : i32
    %4 = arith.cmpi slt, %2, %c0_i32_1 : i32
    %c0_i32_2 = arith.constant 0 : i32
    %5 = arith.cmpi slt, %1, %c0_i32_2 : i32
    %6 = arith.xori %4, %5 : i1
    %7 = arith.andi %6, %3 : i1
    %8 = arith.addi %2, %1 : i32
    %9 = arith.select %7, %8, %2 : i32
    %c0_i32_3 = arith.constant 0 : i32
    %10 = arith.cmpi eq, %arg1, %c0_i32_3 : i32
    %11 = arith.extui %10 : i1 to i32
    %c0_i32_4 = arith.constant 0 : i32
    %12 = arith.cmpi ne, %11, %c0_i32_4 : i32
    scf.if %12 {
      %c0_i32_35 = arith.constant 0 : i32
      %c0_i32_36 = arith.constant 0 : i32
      %c0_i32_37 = arith.constant 0 : i32
      %c0_i32_38 = arith.constant 0 : i32
      %78 = tpu.memref_slice %arg2[%arg0, %c0_i32_37, %c0_i32_38] : memref<2x48x128xbf16, #tpu.memory_space<any>> -> memref<1x48x128xbf16, #tpu.memory_space<any>>
      %79 = tpu.memref_squeeze %78 : memref<1x48x128xbf16, #tpu.memory_space<any>> -> memref<48x128xbf16, #tpu.memory_space<any>>
      %c0_i32_39 = arith.constant 0 : i32
      %c0_i32_40 = arith.constant 0 : i32
      %80 = tpu.memref_slice %arg8[%c0_i32_35, %c0_i32_39, %c0_i32_40] : memref<2x48x128xbf16, #tpu.memory_space<vmem>> -> memref<1x48x128xbf16, #tpu.memory_space<vmem>>
      %81 = tpu.memref_squeeze %80 : memref<1x48x128xbf16, #tpu.memory_space<vmem>> -> memref<48x128xbf16, #tpu.memory_space<vmem>>
      %82 = tpu.memref_slice %arg9[%c0_i32_36] : memref<2x!tpu.dma_semaphore, #tpu.memory_space<semaphore_mem>> -> memref<1x!tpu.dma_semaphore, #tpu.memory_space<semaphore_mem>>
      %83 = tpu.memref_squeeze %82 : memref<1x!tpu.dma_semaphore, #tpu.memory_space<semaphore_mem>> -> memref<!tpu.dma_semaphore, #tpu.memory_space<semaphore_mem>>
      tpu.enqueue_dma source(%79 : memref<48x128xbf16, #tpu.memory_space<any>>) target(%81 : memref<48x128xbf16, #tpu.memory_space<vmem>>) target_semaphore(%83 : memref<!tpu.dma_semaphore, #tpu.memory_space<semaphore_mem>>)
    } else {
    }
    %c1_i32_5 = arith.constant 1 : i32
    %13 = arith.addi %arg1, %c1_i32_5 : i32
    %c1_i32_6 = arith.constant 1 : i32
    %14 = arith.cmpi slt, %13, %c1_i32_6 : i32
    %15 = arith.extui %14 : i1 to i32
    %c0_i32_7 = arith.constant 0 : i32
    %16 = arith.cmpi ne, %15, %c0_i32_7 : i32
    scf.if %16 {
      %c1_i32_35 = arith.constant 1 : i32
      %78 = arith.addi %arg1, %c1_i32_35 : i32
      %c1_i32_36 = arith.constant 1 : i32
      %79 = arith.subi %c1_i32_36, %9 : i32
      %c32_i32_37 = arith.constant 32 : i32
      %80 = arith.muli %78, %c32_i32_37 : i32
      %c0_i32_38 = arith.constant 0 : i32
      %81 = tpu.memref_slice %arg2[%arg0, %80, %c0_i32_38] : memref<2x48x128xbf16, #tpu.memory_space<any>> -> memref<1x48x128xbf16, #tpu.memory_space<any>>
      %82 = tpu.memref_squeeze %81 : memref<1x48x128xbf16, #tpu.memory_space<any>> -> memref<48x128xbf16, #tpu.memory_space<any>>
      %c0_i32_39 = arith.constant 0 : i32
      %c0_i32_40 = arith.constant 0 : i32
      %83 = tpu.memref_slice %arg8[%79, %c0_i32_39, %c0_i32_40] : memref<2x48x128xbf16, #tpu.memory_space<vmem>> -> memref<1x48x128xbf16, #tpu.memory_space<vmem>>
      %84 = tpu.memref_squeeze %83 : memref<1x48x128xbf16, #tpu.memory_space<vmem>> -> memref<48x128xbf16, #tpu.memory_space<vmem>>
      %85 = tpu.memref_slice %arg9[%79] : memref<2x!tpu.dma_semaphore, #tpu.memory_space<semaphore_mem>> -> memref<1x!tpu.dma_semaphore, #tpu.memory_space<semaphore_mem>>
      %86 = tpu.memref_squeeze %85 : memref<1x!tpu.dma_semaphore, #tpu.memory_space<semaphore_mem>> -> memref<!tpu.dma_semaphore, #tpu.memory_space<semaphore_mem>>
      tpu.enqueue_dma source(%82 : memref<48x128xbf16, #tpu.memory_space<any>>) target(%84 : memref<48x128xbf16, #tpu.memory_space<vmem>>) target_semaphore(%86 : memref<!tpu.dma_semaphore, #tpu.memory_space<semaphore_mem>>)
    } else {
    }
    %c0_i32_8 = arith.constant 0 : i32
    %c0_i32_9 = arith.constant 0 : i32
    %c0_i32_10 = arith.constant 0 : i32
    %17 = tpu.memref_slice %arg2[%c0_i32_8, %c0_i32_9, %c0_i32_10] : memref<2x48x128xbf16, #tpu.memory_space<any>> -> memref<1x48x128xbf16, #tpu.memory_space<any>>
    %18 = tpu.memref_squeeze %17 : memref<1x48x128xbf16, #tpu.memory_space<any>> -> memref<48x128xbf16, #tpu.memory_space<any>>
    %c0_i32_11 = arith.constant 0 : i32
    %c0_i32_12 = arith.constant 0 : i32
    %19 = tpu.memref_slice %arg8[%9, %c0_i32_11, %c0_i32_12] : memref<2x48x128xbf16, #tpu.memory_space<vmem>> -> memref<1x48x128xbf16, #tpu.memory_space<vmem>>
    %20 = tpu.memref_squeeze %19 : memref<1x48x128xbf16, #tpu.memory_space<vmem>> -> memref<48x128xbf16, #tpu.memory_space<vmem>>
    %21 = tpu.memref_slice %arg9[%9] : memref<2x!tpu.dma_semaphore, #tpu.memory_space<semaphore_mem>> -> memref<1x!tpu.dma_semaphore, #tpu.memory_space<semaphore_mem>>
    %22 = tpu.memref_squeeze %21 : memref<1x!tpu.dma_semaphore, #tpu.memory_space<semaphore_mem>> -> memref<!tpu.dma_semaphore, #tpu.memory_space<semaphore_mem>>
    tpu.wait_dma2 semaphore(%22 : memref<!tpu.dma_semaphore, #tpu.memory_space<semaphore_mem>>) src(%18 : memref<48x128xbf16, #tpu.memory_space<any>>) dst(%20 : memref<48x128xbf16, #tpu.memory_space<vmem>>)
    %23 = tpu.iota {dimensions = array<i32: 0>} : vector<48x1xi32>
    %c32_i32 = arith.constant 32 : i32
    %24 = arith.muli %arg1, %c32_i32 : i32
    %25 = vector.broadcast %24 : i32 to vector<48x1xi32>
    %26 = arith.addi %25, %23 : vector<48x1xi32>
    %c8_i32 = arith.constant 8 : i32
    %27 = vector.broadcast %c8_i32 : i32 to vector<48x1xi32>
    %28 = arith.subi %26, %27 : vector<48x1xi32>
    %c0_i32_13 = arith.constant 0 : i32
    %29 = vector.broadcast %c0_i32_13 : i32 to vector<48x1xi32>
    %30 = arith.cmpi sge, %28, %29 : vector<48x1xi32>
    %c32_i32_14 = arith.constant 32 : i32
    %31 = vector.broadcast %c32_i32_14 : i32 to vector<48x1xi32>
    %32 = arith.cmpi slt, %28, %31 : vector<48x1xi32>
    %33 = arith.andi %30, %32 : vector<48x1xi1>
    %34 = arith.index_cast %9 : i32 to index
    %c0 = arith.constant 0 : index
    %c0_15 = arith.constant 0 : index
    %35 = vector.load %arg8[%34, %c0, %c0_15] : memref<2x48x128xbf16, #tpu.memory_space<vmem>>, vector<1x48x128xbf16>
    %36 = vector.shape_cast %35 : vector<1x48x128xbf16> to vector<48x128xbf16>
    %c0_16 = arith.constant 0 : index
    %c0_17 = arith.constant 0 : index
    %37 = vector.load %arg3[%c0_16, %c0_17] : memref<128x384xbf16, #tpu.memory_space<vmem>>, vector<128x384xbf16>
    %c0_18 = arith.constant 0 : index
    %c0_19 = arith.constant 0 : index
    %38 = vector.load %arg4[%c0_18, %c0_19] : memref<1x128xf32, #tpu.memory_space<vmem>>, vector<1x128xf32>
    %cst = arith.constant dense<0.000000e+00> : vector<48x384xf32>
    %39 = tpu.matmul %36, %37, %cst {dimension_numbers = #tpu.dot_dimension_numbers<[1], [0], [0], [1], [0, 0, 1, 1], [], []>} : vector<48x128xbf16>, vector<128x384xbf16>, vector<48x384xf32> -> vector<48x384xf32>
    %40 = vector.extract_strided_slice %39 {offsets = [0, 0], sizes = [48, 128], strides = [1, 1]} : vector<48x384xf32> to vector<48x128xf32>
    %41 = vector.extract_strided_slice %39 {offsets = [0, 128], sizes = [48, 128], strides = [1, 1]} : vector<48x384xf32> to vector<48x128xf32>
    %42 = vector.extract_strided_slice %39 {offsets = [0, 256], sizes = [48, 128], strides = [1, 1]} : vector<48x384xf32> to vector<48x128xf32>
    %c1_i32_20 = arith.constant 1 : i32
    %43 = tpu.dynamic_rotate %40 by %c1_i32_20 dim 0 : vector<48x128xf32>, i32 -> vector<48x128xf32>
    %44 = arith.addf %43, %41 : vector<48x128xf32>
    %c47_i32 = arith.constant 47 : i32
    %45 = tpu.dynamic_rotate %42 by %c47_i32 dim 0 : vector<48x128xf32>, i32 -> vector<48x128xf32>
    %46 = arith.addf %44, %45 : vector<48x128xf32>
    %47 = vector.broadcast %38 : vector<1x128xf32> to vector<48x128xf32>
    %48 = arith.addf %46, %47 : vector<48x128xf32>
    %cst_21 = arith.constant 0.000000e+00 : f32
    %49 = vector.broadcast %cst_21 : f32 to vector<48x128xf32>
    %50 = arith.maximumf %48, %49 : vector<48x128xf32>
    %cst_22 = arith.constant 0.000000e+00 : f32
    %51 = vector.shape_cast %33 : vector<48x1xi1> to vector<48x1xi1>
    %52 = vector.broadcast %51 : vector<48x1xi1> to vector<48x128xi1>
    %53 = vector.broadcast %cst_22 : f32 to vector<48x128xf32>
    %54 = arith.select %52, %50, %53 : vector<48x128xi1>, vector<48x128xf32>
    %55 = arith.truncf %54 : vector<48x128xf32> to vector<48x128xbf16>
    %c0_23 = arith.constant 0 : index
    %c0_24 = arith.constant 0 : index
    %56 = vector.load %arg5[%c0_23, %c0_24] : memref<128x384xbf16, #tpu.memory_space<vmem>>, vector<128x384xbf16>
    %c0_25 = arith.constant 0 : index
    %c0_26 = arith.constant 0 : index
    %57 = vector.load %arg6[%c0_25, %c0_26] : memref<1x128xf32, #tpu.memory_space<vmem>>, vector<1x128xf32>
    %cst_27 = arith.constant dense<0.000000e+00> : vector<48x384xf32>
    %58 = tpu.matmul %55, %56, %cst_27 {dimension_numbers = #tpu.dot_dimension_numbers<[1], [0], [0], [1], [0, 0, 1, 1], [], []>} : vector<48x128xbf16>, vector<128x384xbf16>, vector<48x384xf32> -> vector<48x384xf32>
    %59 = vector.extract_strided_slice %58 {offsets = [0, 0], sizes = [48, 128], strides = [1, 1]} : vector<48x384xf32> to vector<48x128xf32>
    %60 = vector.extract_strided_slice %58 {offsets = [0, 128], sizes = [48, 128], strides = [1, 1]} : vector<48x384xf32> to vector<48x128xf32>
    %61 = vector.extract_strided_slice %58 {offsets = [0, 256], sizes = [48, 128], strides = [1, 1]} : vector<48x384xf32> to vector<48x128xf32>
    %c1_i32_28 = arith.constant 1 : i32
    %62 = tpu.dynamic_rotate %59 by %c1_i32_28 dim 0 : vector<48x128xf32>, i32 -> vector<48x128xf32>
    %63 = arith.addf %62, %60 : vector<48x128xf32>
    %c47_i32_29 = arith.constant 47 : i32
    %64 = tpu.dynamic_rotate %61 by %c47_i32_29 dim 0 : vector<48x128xf32>, i32 -> vector<48x128xf32>
    %65 = arith.addf %63, %64 : vector<48x128xf32>
    %66 = vector.broadcast %57 : vector<1x128xf32> to vector<48x128xf32>
    %67 = arith.addf %65, %66 : vector<48x128xf32>
    %cst_30 = arith.constant 0.000000e+00 : f32
    %68 = vector.broadcast %cst_30 : f32 to vector<48x128xf32>
    %69 = arith.maximumf %67, %68 : vector<48x128xf32>
    %cst_31 = arith.constant 0.000000e+00 : f32
    %70 = vector.shape_cast %33 : vector<48x1xi1> to vector<48x1xi1>
    %71 = vector.broadcast %70 : vector<48x1xi1> to vector<48x128xi1>
    %72 = vector.broadcast %cst_31 : f32 to vector<48x128xf32>
    %73 = arith.select %71, %69, %72 : vector<48x128xi1>, vector<48x128xf32>
    %74 = vector.extract_strided_slice %73 {offsets = [8, 0], sizes = [32, 128], strides = [1, 1]} : vector<48x128xf32> to vector<32x128xf32>
    %c0_32 = arith.constant 0 : index
    %c0_33 = arith.constant 0 : index
    %c0_34 = arith.constant 0 : index
    %75 = vector.load %arg7[%c0_32, %c0_33, %c0_34] : memref<1x32x128xf32, #tpu.memory_space<vmem>>, vector<1x32x128xf32>
    %76 = vector.shape_cast %75 : vector<1x32x128xf32> to vector<32x128xf32>
    %77 = vector.shape_cast %74 : vector<32x128xf32> to vector<1x32x128xf32>
    tpu.vector_store %arg7[%c0_32, %c0_33, %c0_34], %77 {strides = array<i32>} : memref<1x32x128xf32, #tpu.memory_space<vmem>>, vector<1x32x128xf32>,
    return
  }
  func.func @transform_1(%arg0: i32, %arg1: i32) -> (i32, i32) {
    %c0_i32 = arith.constant 0 : i32
    %c0_i32_0 = arith.constant 0 : i32
    %c0_i32_1 = arith.constant 0 : i32
    return %c0_i32, %c0_i32_0 : i32, i32
  }
  func.func @transform_2(%arg0: i32, %arg1: i32) -> (i32, i32) {
    %c0_i32 = arith.constant 0 : i32
    %c0_i32_0 = arith.constant 0 : i32
    %c0_i32_1 = arith.constant 0 : i32
    return %c0_i32, %c0_i32_0 : i32, i32
  }
  func.func @transform_3(%arg0: i32, %arg1: i32) -> (i32, i32) {
    %c0_i32 = arith.constant 0 : i32
    %c0_i32_0 = arith.constant 0 : i32
    %c0_i32_1 = arith.constant 0 : i32
    return %c0_i32, %c0_i32_0 : i32, i32
  }
  func.func @transform_4(%arg0: i32, %arg1: i32) -> (i32, i32) {
    %c0_i32 = arith.constant 0 : i32
    %c0_i32_0 = arith.constant 0 : i32
    %c0_i32_1 = arith.constant 0 : i32
    return %c0_i32, %c0_i32_0 : i32, i32
  }
  func.func @transform_5(%arg0: i32, %arg1: i32) -> (i32, i32, i32) {
    %c0_i32 = arith.constant 0 : i32
    %c0_i32_0 = arith.constant 0 : i32
    return %arg0, %arg1, %c0_i32 : i32, i32, i32
  }
}

</mosaic_0001>

<llo_original>
// kernel: block_forward.1
$region0: #{block_forward.1}
  #allocation0 [shape = 'u32[]', space=smem, size = 0x4, offset = 0x4, fixed_abs, tag = 'smem constant byte address 0x4 - core index']
  #allocation1 [shape = 'u32[144,128]{1,0:T(1,128)}', space=vmem, size = 0x12000, scoped, tag = 'internal scratch']
  #allocation2 [shape = 'bf16[2,48,128]{2,1,0:T(16,128)(2,1)}', space=vmem, size = 0x6000, scoped, tag = 'scratch operand']
  #allocation3 [shape = 's32[2]{0}', space=sflag, size = 0x8, scoped, tag = 'scratch operand']
  #allocation8 [shape = 's32[]', space=sflag, size = 0x4, offset = 0, fixed_abs, tag = 'sflag constant byte address 0x0 - dummy sync flag']
  #allocation9 [shape = 's32[]', space=sflag, size = 0x4, offset = 0, fixed_abs, tag = 'sflag constant byte address 0x0 - dummy sync flag']
  %s0 = inlined_call_operand.vmem [shape: bf16[2,48,128], index: 0, kind: input, shape index: {}]
  %s1 = inlined_call_operand.hbm [shape: bf16[128,384], index: 1, kind: input, shape index: {}]
  %s2 = inlined_call_operand.vmem [shape: f32[1,128], index: 2, kind: input, shape index: {}]
  %s3 = inlined_call_operand.hbm [shape: bf16[128,384], index: 3, kind: input, shape index: {}]
  %s4 = inlined_call_operand.vmem [shape: f32[1,128], index: 4, kind: input, shape index: {}]
  %s5 = inlined_call_operand.vmem [shape: f32[2,32,128], index: 5, kind: output, shape index: {}]
  %s6 = sld [smem:[#allocation0]]
  $region133: #{block_forward.1} parent=0
    _
  %s8 = ssub.s32 1, %s6
  %s9 = scalar_select 0, %s8, %s6
  $region1: #{block_forward.1} parent=0
    #allocation4 [shape = 'u8[98304]{0}', space=vmem, size = 0x18000, scoped, tag = 'input window, operand 1, single buffered']
    #allocation5 [shape = 's32[2]{0}', space=sflag, size = 0x8, scoped, tag = 'scoped memory for block_forward.1']
    #allocation6 [shape = 'u8[98304]{0}', space=vmem, size = 0x18000, scoped, tag = 'input window, operand 3, single buffered']
    #allocation7 [shape = 's32[1]{0}', space=sflag, size = 0x4, scoped, tag = 'scoped memory for block_forward.1']
    %10 = vsyncpa [#allocation5], 0
    %11 = vsyncpa [#allocation7], 0
    loop: start=0, step=1, limit=4
    $region2: #{block_forward.1} parent=1 // loop_pre_header
      _
    $region3: #{block_forward.1} parent=1 // loop_header
      %s13 = sphi 0, %s17
      %p14 = scmp.ge.s32.totalorder %s13, 4
      %s20 = sphi 0, %s32
      %s21 = sphi 0, %s28
      %s22 = sphi 0, %s20
      %s23 = sphi 0, %s21
      %s24 = sphi 0, %s22
      %s25 = sphi 0, %s23
      %s33 = sphi 0, %s33
      %s35 = sphi 0, %s33
      %s36 = sphi 0, %s35
      %s50 = sphi 0, %s36
      %s54 = sphi 0, %s54
      %s56 = sphi 0, %s54
      %s57 = sphi 0, %s56
      %s71 = sphi 0, %s57
      %s75 = sphi 0, %s75
      %s77 = sphi 0, %s75
      %s78 = sphi 0, %s77
      %s92 = sphi 0, %s78
      %s96 = sphi 0, %s96
      %s98 = sphi 0, %s96
      %s99 = sphi 0, %s98
      %s113 = sphi 0, %s99
      %s121 = sphi 0, %s123
      %s124 = sphi 0, %s121
      %s125 = sphi 0, %s124
      %s141 = sphi 0, %s125
    $region4: #{block_forward.1} parent=1 // loop_header_branch
      %16 = sbr.rel (%p14) target = $region8
    $region5: #{block_forward.1} parent=1 // loop_body
      %s18 = ssub.s32 %s13, 1
      %s19 = ssub.s32 %s13, 2
      %s26 = sadd.s32 1, %s21
      %p27 = scmp.ge.s32.totalorder %s26, 1
      %s28 = scalar_select %p27, 0, %s26
      %s29 = sadd.s32 1, %s20
      %s30 = scalar_select %p27, %s29, %s20
      %p31 = scmp.ge.s32.totalorder %s30, 2
      %s32 = scalar_select %p31, 0, %s30
      %s34 = sadd.s32 %s33, 1
      %p37 = scmp.eq.s32.totalorder %s13, 1
      %p38 = scmp.ne.s32.totalorder %s33, %s35
      %p39 = scmp.eq.s32.totalorder %s13, 0
      %p40 = por %p38, %p39
      %p41 = scmp.ne.s32.totalorder %s33, %s35
      %p42 = scmp.eq.s32.totalorder %s18, 1
      %p43 = por %p41, %p42
      %p44 = scmp.ne.s32.totalorder %s35, %s36
      %p45 = scmp.eq.s32.totalorder %s18, 0
      %p46 = por %p44, %p45
      %p47 = scmp.ne.s32.totalorder %s35, %s36
      %p48 = scmp.eq.s32.totalorder %s19, 1
      %p49 = por %p47, %p48
      %p51 = scmp.ne.s32.totalorder %s36, %s50
      %p52 = scmp.eq.s32.totalorder %s19, 0
      %p53 = por %p51, %p52
      %s55 = sadd.s32 %s54, 1
      %p58 = scmp.eq.s32.totalorder %s13, 1
      %p59 = scmp.ne.s32.totalorder %s54, %s56
      %p60 = scmp.eq.s32.totalorder %s13, 0
      %p61 = por %p59, %p60
      %p62 = scmp.ne.s32.totalorder %s54, %s56
      %p63 = scmp.eq.s32.totalorder %s18, 1
      %p64 = por %p62, %p63
      %p65 = scmp.ne.s32.totalorder %s56, %s57
      %p66 = scmp.eq.s32.totalorder %s18, 0
      %p67 = por %p65, %p66
      %p68 = scmp.ne.s32.totalorder %s56, %s57
      %p69 = scmp.eq.s32.totalorder %s19, 1
      %p70 = por %p68, %p69
      %p72 = scmp.ne.s32.totalorder %s57, %s71
      %p73 = scmp.eq.s32.totalorder %s19, 0
      %p74 = por %p72, %p73
      %s76 = sadd.s32 %s75, 1
      %p79 = scmp.eq.s32.totalorder %s13, 1
      %p80 = scmp.ne.s32.totalorder %s75, %s77
      %p81 = scmp.eq.s32.totalorder %s13, 0
      %p82 = por %p80, %p81
      %p83 = scmp.ne.s32.totalorder %s75, %s77
      %p84 = scmp.eq.s32.totalorder %s18, 1
      %p85 = por %p83, %p84
      %p86 = scmp.ne.s32.totalorder %s77, %s78
      %p87 = scmp.eq.s32.totalorder %s18, 0
      %p88 = por %p86, %p87
      %p89 = scmp.ne.s32.totalorder %s77, %s78
      %p90 = scmp.eq.s32.totalorder %s19, 1
      %p91 = por %p89, %p90
      %p93 = scmp.ne.s32.totalorder %s78, %s92
      %p94 = scmp.eq.s32.totalorder %s19, 0
      %p95 = por %p93, %p94
      %s97 = sadd.s32 %s96, 1
      %p100 = scmp.eq.s32.totalorder %s13, 1
      %p101 = scmp.ne.s32.totalorder %s96, %s98
      %p102 = scmp.eq.s32.totalorder %s13, 0
      %p103 = por %p101, %p102
      %p104 = scmp.ne.s32.totalorder %s96, %s98
      %p105 = scmp.eq.s32.totalorder %s18, 1
      %p106 = por %p104, %p105
      %p107 = scmp.ne.s32.totalorder %s98, %s99
      %p108 = scmp.eq.s32.totalorder %s18, 0
      %p109 = por %p107, %p108
      %p110 = scmp.ne.s32.totalorder %s98, %s99
      %p111 = scmp.eq.s32.totalorder %s19, 1
      %p112 = por %p110, %p111
      %p114 = scmp.ne.s32.totalorder %s99, %s113
      %p115 = scmp.eq.s32.totalorder %s19, 0
      %p116 = por %p114, %p115
      %s117 = ssub.s32 %s20, %s32
      %s118 = ssub.s32 %s21, %s28
      %s119 = sor.u32 %s117, %s118
      %p120 = scmp.eq.s32.totalorder %s119, 0
      %s122 = sadd.s32 %s121, 1
      %s123 = scalar_select %p120, %s121, %s122
      %p126 = pneg %p120
      %p127 = scmp.eq.s32.totalorder %s13, 1
      %p128 = por %p126, %p127
      %p129 = scmp.ne.s32.totalorder %s121, %s124
      %p130 = scmp.eq.s32.totalorder %s13, 0
      %p131 = por %p129, %p130
      %p132 = scmp.ne.s32.totalorder %s121, %s124
      %p133 = scmp.eq.s32.totalorder %s18, 1
      %p134 = por %p132, %p133
      %p135 = scmp.ne.s32.totalorder %s124, %s125
      %p136 = scmp.eq.s32.totalorder %s18, 0
      %p137 = por %p135, %p136
      %p138 = scmp.ne.s32.totalorder %s124, %s125
      %p139 = scmp.eq.s32.totalorder %s19, 1
      %p140 = por %p138, %p139
      %p142 = scmp.ne.s32.totalorder %s125, %s141
      %p143 = scmp.eq.s32.totalorder %s19, 0
      %p144 = por %p142, %p143
      %p145 = scmp.le.s32.totalorder 1, %s13
      %p146 = scmp.lt.s32.totalorder %s13, 3
      %p147 = pnand %p145, %p146
      %p148 = pneg %p147
      // Predicated region
      $region9: #{block_forward.1} parent=5 // pred_check
        _
      $region10: #{block_forward.1} parent=5 // pred_check_branch
        %150 = sbr.rel (%p147) target = $region12
      $region11: #{block_forward.1} parent=5 // pred_region
        %s151 = ssub.s32 %s13, 1
        // Predicated region
        $region13: #{block_forward.1} parent=11 // pred_check
          %p152 = pneg %p46
        $region14: #{block_forward.1} parent=11 // pred_check_branch
          %154 = sbr.rel (%p152) target = $region16
        $region15: #{block_forward.1} parent=11 // pred_region
          %s156 = ssub.s32 3072, 3072
          %157 = vsyncadd [#allocation5], %s156
          %s158 = sshll.u32 [#allocation4], 4
          %s159 = int_to_ptr.vmem [resolvable:$true] %s158
          %164 = dma.hbm_to_vmem [thread:$0]  %s1, 3072, %s159, [#allocation5], 192, 192, 12
        $region16: #{block_forward.1} parent=11 // pred_fallthru
          _
        // Predicated region
        $region17: #{block_forward.1} parent=11 // pred_check
          %p165 = pneg %p67
        $region18: #{block_forward.1} parent=11 // pred_check_branch
          %167 = sbr.rel (%p165) target = $region20
        $region19: #{block_forward.1} parent=11 // pred_region
          _
        $region20: #{block_forward.1} parent=11 // pred_fallthru
          _
        // Predicated region
        $region21: #{block_forward.1} parent=11 // pred_check
          %p168 = pneg %p88
        $region22: #{block_forward.1} parent=11 // pred_check_branch
          %170 = sbr.rel (%p168) target = $region24
        $region23: #{block_forward.1} parent=11 // pred_region
          %s172 = ssub.s32 3072, 3072
          %173 = vsyncadd [#allocation7], %s172
          %s174 = sshll.u32 [#allocation6], 4
          %s175 = int_to_ptr.vmem [resolvable:$true] %s174
          %180 = dma.hbm_to_vmem [thread:$0]  %s3, 3072, %s175, [#allocation7], 192, 192, 12
        $region24: #{block_forward.1} parent=11 // pred_fallthru
          _
        // Predicated region
        $region25: #{block_forward.1} parent=11 // pred_check
          %p181 = pneg %p109
        $region26: #{block_forward.1} parent=11 // pred_check_branch
          %183 = sbr.rel (%p181) target = $region28
        $region27: #{block_forward.1} parent=11 // pred_region
          _
        $region28: #{block_forward.1} parent=11 // pred_fallthru
          _
      $region12: #{block_forward.1} parent=5 // pred_fallthru
        _
      %p184 = scmp.lt.s32.totalorder %s13, 2
      // Predicated region
      $region29: #{block_forward.1} parent=5 // pred_check
        %p185 = pneg %p184
      $region30: #{block_forward.1} parent=5 // pred_check_branch
        %187 = sbr.rel (%p185) target = $region32
      $region31: #{block_forward.1} parent=5 // pred_region
        _
      $region32: #{block_forward.1} parent=5 // pred_fallthru
        _
      %p188 = scmp.le.s32.totalorder 1, %s13
      %p189 = scmp.lt.s32.totalorder %s13, 3
      %p190 = pnand %p188, %p189
      %p191 = pneg %p190
      // Predicated region
      $region33: #{block_forward.1} parent=5 // pred_check
        _
      $region34: #{block_forward.1} parent=5 // pred_check_branch
        %193 = sbr.rel (%p190) target = $region36
      $region35: #{block_forward.1} parent=5 // pred_region
        %s194 = ssub.s32 %s13, 1
        // Predicated region
        $region37: #{block_forward.1} parent=35 // pred_check
          %p195 = pneg %p46
        $region38: #{block_forward.1} parent=35 // pred_check_branch
          %197 = sbr.rel (%p195) target = $region40
        $region39: #{block_forward.1} parent=35 // pred_region
          %198 = dma.done [#allocation5], 3072
        $region40: #{block_forward.1} parent=35 // pred_fallthru
          _
        // Predicated region
        $region41: #{block_forward.1} parent=35 // pred_check
          %p199 = pneg %p88
        $region42: #{block_forward.1} parent=35 // pred_check_branch
          %201 = sbr.rel (%p199) target = $region44
        $region43: #{block_forward.1} parent=35 // pred_region
          %202 = dma.done [#allocation7], 3072
        $region44: #{block_forward.1} parent=35 // pred_fallthru
          _
        %p203 = pneg %p46
        %p204 = pneg %p43
        %p205 = pneg %p67
        %p206 = pneg %p64
        %p207 = pneg %p88
        %p208 = pneg %p85
        %p209 = pneg %p109
        %p210 = pneg %p106
        %p211 = pneg %p137
        %p212 = pneg %p134
        %s213 = smul.u32 4, %s23
        %p214 = scmp.lt.s32.totalorder %s22, 1
        %s215 = scalar_select %p214, %s22, 1
        %p216 = scmp.lt.s32.totalorder %s213, 3
        %s217 = scalar_select %p216, %s213, 3
        %s218 = smul.addr %s215, 4
        %s219 = sadd.s32 %s217, %s218
        %s220 = smul.addr %s219, 8
        %s221 = scalar_lea.vmem %s5, %s220
        %s222 = smul.u32 4, %s23
        %p223 = scmp.lt.s32.totalorder %s22, 1
        %s224 = scalar_select %p223, %s22, 1
        %p225 = scmp.lt.s32.totalorder %s222, 3
        %s226 = scalar_select %p225, %s222, 3
        %s227 = smul.addr %s224, 4
        %s228 = sadd.s32 %s226, %s227
        %s229 = smul.addr %s228, 8
        %s230 = scalar_lea.vmem %s5, %s229
        %s231 = smul.u32 4, %s23
        %p233 = scmp.lt.s32.totalorder %s23, 0
        %s234 = ssub.s32 0, %s23
        %s235 = scalar_select %p233, %s234, %s23
        %s236 = sand.u32 %s235, 1
        %s237 = ssub.s32 0, %s236
        %s238 = scalar_select %p233, %s237, %s236
        %p239 = scmp.ne.s32.totalorder %s238, 0
        %p240 = scmp.lt.s32.totalorder %s238, 0
        %p241 = pnand %p240, %p239
        %p242 = pneg %p241
        %s243 = sadd.s32 %s238, 2
        %s244 = scalar_select %p242, %s243, %s238
        %p245 = scmp.eq.s32.totalorder %s23, 0
        // Predicated region
        $region45: #{block_forward.1} parent=35 // pred_check
          %p246 = pneg %p245
        $region46: #{block_forward.1} parent=35 // pred_check_branch
          %248 = sbr.rel (%p246) target = $region48
        $region47: #{block_forward.1} parent=35 // pred_region
          %s249 = smul.u32 %s22, 6
          %s250 = smul.addr %s249, 4
          %s251 = scalar_lea.vmem %s0, %s250
          %p253 = scmp.lt.u32.totalorder 24, 8
          %p254 = pneg %p253
          // Predicated region
          $region49: #{block_forward.1} parent=47 // pred_check
            _
          $region50: #{block_forward.1} parent=47 // pred_check_branch
            %256 = sbr.rel (%p253) target = $region52
          $region51: #{block_forward.1} parent=47 // pred_region
            %s271 = sand.u32 24, 7
            %p272 = scmp.eq.s32.totalorder %s271, 0
            // Predicated region
            $region64: #{block_forward.1} parent=51 // pred_check
              %p273 = pneg %p272
            $region65: #{block_forward.1} parent=51 // pred_check_branch
              %275 = sbr.rel (%p273) target = $region67
            $region66: #{block_forward.1} parent=51 // pred_region
              loop: start=0, step=1, limit=1
              $region68: #{block_forward.1} parent=66 // loop_pre_header
                _
              $region69: #{block_forward.1} parent=66 // loop_header
                %s277 = sphi 0, %s281
                %p278 = scmp.ge.s32.totalorder %s277, 1
                %s282 = sphi %s251, %s251
                %s283 = sphi [#allocation2], [#allocation2]
              $region70: #{block_forward.1} parent=66 // loop_header_branch
                %280 = sbr.rel (%p278) target = $region74
              $region71: #{block_forward.1} parent=66 // loop_body
                %v284 = vld [vmem:[%s282] sm:$0xff]
                %285 = vst [vmem:[%s283] sm:$0xff] %v284
                %v286 = vld [vmem:[%s282 + $0x8] sm:$0xff]
                %287 = vst [vmem:[%s283 + $0x8] sm:$0xff] %v286
                %v288 = vld [vmem:[%s282 + $0x10] sm:$0xff]
                %289 = vst [vmem:[%s283 + $0x10] sm:$0xff] %v288
              $region72: #{block_forward.1} parent=66 // loop_footer
                %s281 = sadd.s32 1, %s277
              $region73: #{block_forward.1} parent=66 // loop_footer_branch
                %276 = sbr.rel target = $region69
              $region74: #{block_forward.1} parent=66 // loop_exit
                _
            $region67: #{block_forward.1} parent=51 // pred_fallthru
              _
            %p290 = pneg %p272
            // Predicated region
            $region75: #{block_forward.1} parent=51 // pred_check
              _
            $region76: #{block_forward.1} parent=51 // pred_check_branch
              %292 = sbr.rel (%p272) target = $region78
            $region77: #{block_forward.1} parent=51 // pred_region
              %s293 = sand.u32 24, 7
            $region78: #{block_forward.1} parent=51 // pred_fallthru
              _
          $region52: #{block_forward.1} parent=47 // pred_fallthru
            _
          // Predicated region
          $region53: #{block_forward.1} parent=47 // pred_check
            %p257 = pneg %p253
          $region54: #{block_forward.1} parent=47 // pred_check_branch
            %259 = sbr.rel (%p257) target = $region56
          $region55: #{block_forward.1} parent=47 // pred_region
            %s260 = sshllo.u32 0, 24
            loop: start=0, step=1, limit=1
            $region57: #{block_forward.1} parent=55 // loop_pre_header
              _
            $region58: #{block_forward.1} parent=55 // loop_header
              %s262 = sphi 0, %s266
              %p263 = scmp.ge.s32.totalorder %s262, 1
              %s267 = sphi %s251, %s251
              %s268 = sphi [#allocation2], [#allocation2]
            $region59: #{block_forward.1} parent=55 // loop_header_branch
              %265 = sbr.rel (%p263) target = $region63
            $region60: #{block_forward.1} parent=55 // loop_body
              %v269 = vld [vmem:[%s267] sm:%s260]
              %270 = vst [vmem:[%s268] sm:%s260] %v269
            $region61: #{block_forward.1} parent=55 // loop_footer
              %s266 = sadd.s32 1, %s262
            $region62: #{block_forward.1} parent=55 // loop_footer_branch
              %261 = sbr.rel target = $region58
            $region63: #{block_forward.1} parent=55 // loop_exit
              _
          $region56: #{block_forward.1} parent=47 // pred_fallthru
            _
          // Predicated region
          $region79: #{block_forward.1} parent=47 // pred_check
            _
          $region80: #{block_forward.1} parent=47 // pred_check_branch
            %296 = sbr.rel (0) target = $region82
          $region81: #{block_forward.1} parent=47 // pred_region
            %297 = vsyncadd [#allocation3], 384
          $region82: #{block_forward.1} parent=47 // pred_fallthru
            _
        $region48: #{block_forward.1} parent=35 // pred_fallthru
          _
        %s298 = sadd.s32 %s23, 1
        %p299 = scmp.lt.s32.totalorder %s298, 1
        // Predicated region
        $region83: #{block_forward.1} parent=35 // pred_check
          %p300 = pneg %p299
        $region84: #{block_forward.1} parent=35 // pred_check_branch
          %302 = sbr.rel (%p300) target = $region86
        $region85: #{block_forward.1} parent=35 // pred_region
          %s303 = ssub.s32 1, %s244
          %s304 = smul.u32 %s298, 32
          %s305 = sshra.s32 %s304, 3
          %s306 = sand.u32 %s304, 7
          %s307 = smul.u32 %s22, 6
          %s308 = sadd.s32 %s305, %s307
          %s309 = smul.addr %s308, 4
          %s310 = scalar_lea.vmem %s0, %s309
          %s311 = smul.u32 %s303, 3
          %s312 = smul.addr %s311, 8
          %s313 = scalar_lea.vmem [#allocation2], %s312
          %s314 = scalar_lea.sflag [#allocation3], %s303
          %p316 = scmp.lt.u32.totalorder 24, 8
          %p317 = pneg %p316
          // Predicated region
          $region87: #{block_forward.1} parent=85 // pred_check
            _
          $region88: #{block_forward.1} parent=85 // pred_check_branch
            %319 = sbr.rel (%p316) target = $region90
          $region89: #{block_forward.1} parent=85 // pred_region
            %s334 = sand.u32 24, 7
            %p335 = scmp.eq.s32.totalorder %s334, 0
            // Predicated region
            $region102: #{block_forward.1} parent=89 // pred_check
              %p336 = pneg %p335
            $region103: #{block_forward.1} parent=89 // pred_check_branch
              %338 = sbr.rel (%p336) target = $region105
            $region104: #{block_forward.1} parent=89 // pred_region
              loop: start=0, step=1, limit=1
              $region106: #{block_forward.1} parent=104 // loop_pre_header
                _
              $region107: #{block_forward.1} parent=104 // loop_header
                %s340 = sphi 0, %s344
                %p341 = scmp.ge.s32.totalorder %s340, 1
                %s345 = sphi %s310, %s310
                %s346 = sphi %s313, %s313
              $region108: #{block_forward.1} parent=104 // loop_header_branch
                %343 = sbr.rel (%p341) target = $region112
              $region109: #{block_forward.1} parent=104 // loop_body
                %v347 = vld [vmem:[%s345] sm:$0xff]
                %348 = vst [vmem:[%s346] sm:$0xff] %v347
                %v349 = vld [vmem:[%s345 + $0x8] sm:$0xff]
                %350 = vst [vmem:[%s346 + $0x8] sm:$0xff] %v349
                %v351 = vld [vmem:[%s345 + $0x10] sm:$0xff]
                %352 = vst [vmem:[%s346 + $0x10] sm:$0xff] %v351
              $region110: #{block_forward.1} parent=104 // loop_footer
                %s344 = sadd.s32 1, %s340
              $region111: #{block_forward.1} parent=104 // loop_footer_branch
                %339 = sbr.rel target = $region107
              $region112: #{block_forward.1} parent=104 // loop_exit
                _
            $region105: #{block_forward.1} parent=89 // pred_fallthru
              _
            %p353 = pneg %p335
            // Predicated region
            $region113: #{block_forward.1} parent=89 // pred_check
              _
            $region114: #{block_forward.1} parent=89 // pred_check_branch
              %355 = sbr.rel (%p335) target = $region116
            $region115: #{block_forward.1} parent=89 // pred_region
              %s356 = sand.u32 24, 7
            $region116: #{block_forward.1} parent=89 // pred_fallthru
              _
          $region90: #{block_forward.1} parent=85 // pred_fallthru
            _
          // Predicated region
          $region91: #{block_forward.1} parent=85 // pred_check
            %p320 = pneg %p316
          $region92: #{block_forward.1} parent=85 // pred_check_branch
            %322 = sbr.rel (%p320) target = $region94
          $region93: #{block_forward.1} parent=85 // pred_region
            %s323 = sshllo.u32 0, 24
            loop: start=0, step=1, limit=1
            $region95: #{block_forward.1} parent=93 // loop_pre_header
              _
            $region96: #{block_forward.1} parent=93 // loop_header
              %s325 = sphi 0, %s329
              %p326 = scmp.ge.s32.totalorder %s325, 1
              %s330 = sphi %s310, %s310
              %s331 = sphi %s313, %s313
            $region97: #{block_forward.1} parent=93 // loop_header_branch
              %328 = sbr.rel (%p326) target = $region101
            $region98: #{block_forward.1} parent=93 // loop_body
              %v332 = vld [vmem:[%s330] sm:%s323]
              %333 = vst [vmem:[%s331] sm:%s323] %v332
            $region99: #{block_forward.1} parent=93 // loop_footer
              %s329 = sadd.s32 1, %s325
            $region100: #{block_forward.1} parent=93 // loop_footer_branch
              %324 = sbr.rel target = $region96
            $region101: #{block_forward.1} parent=93 // loop_exit
              _
          $region94: #{block_forward.1} parent=85 // pred_fallthru
            _
          // Predicated region
          $region117: #{block_forward.1} parent=85 // pred_check
            _
          $region118: #{block_forward.1} parent=85 // pred_check_branch
            %359 = sbr.rel (0) target = $region120
          $region119: #{block_forward.1} parent=85 // pred_region
            %360 = vsyncadd %s314, 384
          $region120: #{block_forward.1} parent=85 // pred_fallthru
            _
        $region86: #{block_forward.1} parent=35 // pred_fallthru
          _
        %s361 = smul.u32 %s244, 3
        %s362 = smul.addr %s361, 8
        %s363 = scalar_lea.vmem [#allocation2], %s362
        %s364 = scalar_lea.sflag [#allocation3], %s244
        %s365 = smul.u32 4, 6
        %s366 = smul.u32 %s365, 1
        %s367 = sshll.u32 %s366, 4
        %368 = dma.done %s364, %s367
        %v369 = vlaneseq
        %v370 = vshrl.u32 %v369, 7
        %v371 = vadd.s32 %v370, 8
        %v372 = vadd.s32 %v370, 16
        %v373 = vadd.s32 %v370, 24
        %v374 = vadd.s32 %v370, 32
        %v375 = vadd.s32 %v370, 40
        %s376 = smul.u32 %s23, 32
        %v377 = vstv %s376
        %v378 = vadd.s32 %v377, %v370
        %v379 = vadd.s32 %v377, %v371
        %v380 = vadd.s32 %v377, %v372
        %v381 = vadd.s32 %v377, %v373
        %v382 = vadd.s32 %v377, %v374
        %v383 = vadd.s32 %v377, %v375
        %v384 = vsub.s32 %v378, 8
        %v385 = vsub.s32 %v379, 8
        %v386 = vsub.s32 %v380, 8
        %v387 = vsub.s32 %v381, 8
        %v388 = vsub.s32 %v382, 8
        %v389 = vsub.s32 %v383, 8
        %vm390 = vcmp.ge.s32.totalorder %v384, 0
        %vm391 = vcmp.ge.s32.totalorder %v385, 0
        %vm392 = vcmp.ge.s32.totalorder %v386, 0
        %vm393 = vcmp.ge.s32.totalorder %v387, 0
        %vm394 = vcmp.ge.s32.totalorder %v388, 0
        %vm395 = vcmp.ge.s32.totalorder %v389, 0
        %vm396 = vcmp.lt.s32.totalorder %v384, 32
        %vm397 = vcmp.lt.s32.totalorder %v385, 32
        %vm398 = vcmp.lt.s32.totalorder %v386, 32
        %vm399 = vcmp.lt.s32.totalorder %v387, 32
        %vm400 = vcmp.lt.s32.totalorder %v388, 32
        %vm401 = vcmp.lt.s32.totalorder %v389, 32
        %vm402 = vmand %vm390, %vm396
        %vm403 = vmand %vm391, %vm397
        %vm404 = vmand %vm392, %vm398
        %vm405 = vmand %vm393, %vm399
        %vm406 = vmand %vm394, %vm400
        %vm407 = vmand %vm395, %vm401
        %v408 = vld [vmem:[%s363] sm:$0xff]
        %v409 = vld [vmem:[%s363 + $0x8] sm:$0xff]
        %v410 = vld [vmem:[%s363 + $0x10] sm:$0xff]
        %v411 = vld [vmem:[#allocation4] sm:$0xff]
        %v412 = vld [vmem:[#allocation4 + $0x8] sm:$0xf]
        %v413 = vld [vmem:[#allocation4 + $0xc] sm:$0xff]
        %v414 = vld [vmem:[#allocation4 + $0x14] sm:$0xf]
        %v415 = vld [vmem:[#allocation4 + $0x18] sm:$0xff]
        %v416 = vld [vmem:[#allocation4 + $0x20] sm:$0xf]
        %v417 = vld [vmem:[#allocation4 + $0x24] sm:$0xff]
        %v418 = vld [vmem:[#allocation4 + $0x2c] sm:$0xf]
        %v419 = vld [vmem:[#allocation4 + $0x30] sm:$0xff]
        %v420 = vld [vmem:[#allocation4 + $0x38] sm:$0xf]
        %v421 = vld [vmem:[#allocation4 + $0x3c] sm:$0xff]
        %v422 = vld [vmem:[#allocation4 + $0x44] sm:$0xf]
        %v423 = vld [vmem:[#allocation4 + $0x48] sm:$0xff]
        %v424 = vld [vmem:[#allocation4 + $0x50] sm:$0xf]
        %v425 = vld [vmem:[#allocation4 + $0x54] sm:$0xff]
        %v426 = vld [vmem:[#allocation4 + $0x5c] sm:$0xf]
        %v427 = vld [vmem:[#allocation4 + $0x60] sm:$0xff]
        %v428 = vld [vmem:[#allocation4 + $0x68] sm:$0xf]
        %v429 = vld [vmem:[#allocation4 + $0x6c] sm:$0xff]
        %v430 = vld [vmem:[#allocation4 + $0x74] sm:$0xf]
        %v431 = vld [vmem:[#allocation4 + $0x78] sm:$0xff]
        %v432 = vld [vmem:[#allocation4 + $0x80] sm:$0xf]
        %v433 = vld [vmem:[#allocation4 + $0x84] sm:$0xff]
        %v434 = vld [vmem:[#allocation4 + $0x8c] sm:$0xf]
        %v435 = vld [vmem:[#allocation4 + $0x90] sm:$0xff]
        %v436 = vld [vmem:[#allocation4 + $0x98] sm:$0xf]
        %v437 = vld [vmem:[#allocation4 + $0x9c] sm:$0xff]
        %v438 = vld [vmem:[#allocation4 + $0xa4] sm:$0xf]
        %v439 = vld [vmem:[#allocation4 + $0xa8] sm:$0xff]
        %v440 = vld [vmem:[#allocation4 + $0xb0] sm:$0xf]
        %v441 = vld [vmem:[#allocation4 + $0xb4] sm:$0xff]
        %v442 = vld [vmem:[#allocation4 + $0xbc] sm:$0xf]
        %v443 = vld [vmem:[%s2] sm:$0x1]
        %v476 = vunpack.c.l.b16 %v411
        %v477 = vunpack.c.h.b16 %v411
        %v478 = vunpack.c.l.b16 %v412
        %v479 = vunpack.c.l.b16 %v413
        %v480 = vunpack.c.h.b16 %v413
        %v481 = vunpack.c.l.b16 %v414
        %v482 = vunpack.c.l.b16 %v415
        %v483 = vunpack.c.h.b16 %v415
        %v484 = vunpack.c.l.b16 %v416
        %v485 = vunpack.c.l.b16 %v417
        %v486 = vunpack.c.h.b16 %v417
        %v487 = vunpack.c.l.b16 %v418
        %v488 = vunpack.c.l.b16 %v419
        %v489 = vunpack.c.h.b16 %v419
        %v490 = vunpack.c.l.b16 %v420
        %v491 = vunpack.c.l.b16 %v421
        %v492 = vunpack.c.h.b16 %v421
        %v493 = vunpack.c.l.b16 %v422
        %v494 = vunpack.c.l.b16 %v423
        %v495 = vunpack.c.h.b16 %v423
        %v496 = vunpack.c.l.b16 %v424
        %v497 = vunpack.c.l.b16 %v425
        %v498 = vunpack.c.h.b16 %v425
        %v499 = vunpack.c.l.b16 %v426
        %v500 = vunpack.c.l.b16 %v427
        %v501 = vunpack.c.h.b16 %v427
        %v502 = vunpack.c.l.b16 %v428
        %v503 = vunpack.c.l.b16 %v429
        %v504 = vunpack.c.h.b16 %v429
        %v505 = vunpack.c.l.b16 %v430
        %v506 = vunpack.c.l.b16 %v431
        %v507 = vunpack.c.h.b16 %v431
        %v508 = vunpack.c.l.b16 %v432
        %v509 = vunpack.c.l.b16 %v433
        %v510 = vunpack.c.h.b16 %v433
        %v511 = vunpack.c.l.b16 %v434
        %v512 = vunpack.c.l.b16 %v435
        %v513 = vunpack.c.h.b16 %v435
        %v514 = vunpack.c.l.b16 %v436
        %v515 = vunpack.c.l.b16 %v437
        %v516 = vunpack.c.h.b16 %v437
        %v517 = vunpack.c.l.b16 %v438
        %v518 = vunpack.c.l.b16 %v439
        %v519 = vunpack.c.h.b16 %v439
        %v520 = vunpack.c.l.b16 %v440
        %v521 = vunpack.c.l.b16 %v441
        %v522 = vunpack.c.h.b16 %v441
        %v523 = vunpack.c.l.b16 %v442
        %v524 = vpack.c.b16 %v479, %v476
        %v525 = vpack.c.b16 %v480, %v477
        %v526 = vpack.c.b16 %v481, %v478
        %v527 = vpack.c.b16 %v485, %v482
        %v528 = vpack.c.b16 %v486, %v483
        %v529 = vpack.c.b16 %v487, %v484
        %v530 = vpack.c.b16 %v491, %v488
        %v531 = vpack.c.b16 %v492, %v489
        %v532 = vpack.c.b16 %v493, %v490
        %v533 = vpack.c.b16 %v497, %v494
        %v534 = vpack.c.b16 %v498, %v495
        %v535 = vpack.c.b16 %v499, %v496
        %v536 = vpack.c.b16 %v503, %v500
        %v537 = vpack.c.b16 %v504, %v501
        %v538 = vpack.c.b16 %v505, %v502
        %v539 = vpack.c.b16 %v509, %v506
        %v540 = vpack.c.b16 %v510, %v507
        %v541 = vpack.c.b16 %v511, %v508
        %v542 = vpack.c.b16 %v515, %v512
        %v543 = vpack.c.b16 %v516, %v513
        %v544 = vpack.c.b16 %v517, %v514
        %v545 = vpack.c.b16 %v521, %v518
        %v546 = vpack.c.b16 %v522, %v519
        %v547 = vpack.c.b16 %v523, %v520
        %572 = vmatprep.subr.bf16.mxu0 %v525
        %573 = vmatpush1.bf16.msra.mxu0 %v524
        %574 = vmatprep.subr.bf16.mxu0 %v528
        %575 = vmatpush1.bf16.msra.mxu0 %v527
        %576 = vmatprep.subr.bf16.mxu0 %v531
        %577 = vmatpush1.bf16.msra.mxu0 %v530
        %578 = vmatprep.subr.bf16.mxu0 %v534
        %579 = vmatpush1.bf16.msra.mxu0 %v533
        %580 = vmatprep.subr.bf16.mxu0 %v537
        %581 = vmatpush1.bf16.msra.mxu0 %v536
        %582 = vmatprep.subr.bf16.mxu0 %v540
        %583 = vmatpush1.bf16.msra.mxu0 %v539
        %584 = vmatprep.subr.bf16.mxu0 %v543
        %585 = vmatpush1.bf16.msra.mxu0 %v542
        %586 = vmatprep.subr.bf16.mxu0 %v546
        %587 = vmatpush1.bf16.msra.mxu0 %v545
        %588 = vmatprep.subr.bf16.mxu0 0
        %589 = vmatpush1.bf16.msra.mxu0 0
        %590 = vmatprep.subr.bf16.mxu0 0
        %591 = vmatpush1.bf16.msra.mxu0 0
        %592 = vmatprep.subr.bf16.mxu0 0
        %593 = vmatpush1.bf16.msra.mxu0 0
        %594 = vmatprep.subr.bf16.mxu0 0
        %595 = vmatpush1.bf16.msra.mxu0 0
        %596 = vmatprep.subr.bf16.mxu0 0
        %597 = vmatpush1.bf16.msra.mxu0 0
        %598 = vmatprep.subr.bf16.mxu0 0
        %599 = vmatpush1.bf16.msra.mxu0 0
        %600 = vmatprep.subr.bf16.mxu0 0
        %601 = vmatpush1.bf16.msra.mxu0 0
        %602 = vmatprep.subr.bf16.mxu0 0
        %603 = vmatpush1.bf16.msra.mxu0 0
        %604 = vmatprep.mubr.bf16.mxu0 0
        %605 = vmatmul.mubr.bf16.gmra.mrb[0].mxu0 %v408
        %v606 = vpop.f32.mrb[0].mxu0
        %v607 = vadd.f32 0.0, %v606
        %v608 = vpop.f32.mrb[0].mxu0
        %v609 = vadd.f32 0.0, %v608
        %v610 = vpop.f32.mrb[0].mxu0
        %v611 = vadd.f32 0.0, %v610
        %v612 = vpop.f32.mrb[0].mxu0
        %v613 = vadd.f32 0.0, %v612
        %614 = vmatprep.mubr.bf16.mxu0 0
        %615 = vmatmul.mubr.bf16.gmra.mrb[0].mxu0 %v409
        %v616 = vpop.f32.mrb[0].mxu0
        %v617 = vadd.f32 0.0, %v616
        %v618 = vpop.f32.mrb[0].mxu0
        %v619 = vadd.f32 0.0, %v618
        %v620 = vpop.f32.mrb[0].mxu0
        %v621 = vadd.f32 0.0, %v620
        %v622 = vpop.f32.mrb[0].mxu0
        %v623 = vadd.f32 0.0, %v622
        %624 = vmatprep.mubr.bf16.mxu0 0
        %625 = vmatmul.mubr.bf16.gmra.mrb[0].mxu0 %v410
        %v626 = vpop.f32.mrb[0].mxu0
        %v627 = vadd.f32 0.0, %v626
        %v628 = vpop.f32.mrb[0].mxu0
        %v629 = vadd.f32 0.0, %v628
        %v630 = vpop.f32.mrb[0].mxu0
        %v631 = vadd.f32 0.0, %v630
        %v632 = vpop.f32.mrb[0].mxu0
        %v633 = vadd.f32 0.0, %v632
        %634 = vdwg.mxu0
        %635 = vmatprep.subr.bf16.mxu0 0
        %636 = vmatpush1.bf16.msra.mxu0 %v526
        %637 = vmatprep.subr.bf16.mxu0 0
        %638 = vmatpush1.bf16.msra.mxu0 %v529
        %639 = vmatprep.subr.bf16.mxu0 0
        %640 = vmatpush1.bf16.msra.mxu0 %v532
        %641 = vmatprep.subr.bf16.mxu0 0
        %642 = vmatpush1.bf16.msra.mxu0 %v535
        %643 = vmatprep.subr.bf16.mxu0 0
        %644 = vmatpush1.bf16.msra.mxu0 %v538
        %645 = vmatprep.subr.bf16.mxu0 0
        %646 = vmatpush1.bf16.msra.mxu0 %v541
        %647 = vmatprep.subr.bf16.mxu0 0
        %648 = vmatpush1.bf16.msra.mxu0 %v544
        %649 = vmatprep.subr.bf16.mxu0 0
        %650 = vmatpush1.bf16.msra.mxu0 %v547
        %651 = vmatprep.subr.bf16.mxu0 0
        %652 = vmatpush1.bf16.msra.mxu0 0
        %653 = vmatprep.subr.bf16.mxu0 0
        %654 = vmatpush1.bf16.msra.mxu0 0
        %655 = vmatprep.subr.bf16.mxu0 0
        %656 = vmatpush1.bf16.msra.mxu0 0
        %657 = vmatprep.subr.bf16.mxu0 0
        %658 = vmatpush1.bf16.msra.mxu0 0
        %659 = vmatprep.subr.bf16.mxu0 0
        %660 = vmatpush1.bf16.msra.mxu0 0
        %661 = vmatprep.subr.bf16.mxu0 0
        %662 = vmatpush1.bf16.msra.mxu0 0
        %663 = vmatprep.subr.bf16.mxu0 0
        %664 = vmatpush1.bf16.msra.mxu0 0
        %665 = vmatprep.subr.bf16.mxu0 0
        %666 = vmatpush1.bf16.msra.mxu0 0
        %667 = vmatprep.mubr.bf16.mxu0 0
        %668 = vmatmul.mubr.bf16.gmra.mrb[0].mxu0 %v408
        %v669 = vpop.f32.mrb[0].mxu0
        %v670 = vadd.f32 0.0, %v669
        %v671 = vpop.f32.mrb[0].mxu0
        %v672 = vpop.f32.mrb[0].mxu0
        %v673 = vadd.f32 0.0, %v672
        %v674 = vpop.f32.mrb[0].mxu0
        %675 = vmatprep.mubr.bf16.mxu0 0
        %676 = vmatmul.mubr.bf16.gmra.mrb[0].mxu0 %v409
        %v677 = vpop.f32.mrb[0].mxu0
        %v678 = vadd.f32 0.0, %v677
        %v679 = vpop.f32.mrb[0].mxu0
        %v680 = vpop.f32.mrb[0].mxu0
        %v681 = vadd.f32 0.0, %v680
        %v682 = vpop.f32.mrb[0].mxu0
        %683 = vmatprep.mubr.bf16.mxu0 0
        %684 = vmatmul.mubr.bf16.gmra.mrb[0].mxu0 %v410
        %v685 = vpop.f32.mrb[0].mxu0
        %v686 = vadd.f32 0.0, %v685
        %v687 = vpop.f32.mrb[0].mxu0
        %v688 = vpop.f32.mrb[0].mxu0
        %v689 = vadd.f32 0.0, %v688
        %v690 = vpop.f32.mrb[0].mxu0
        %691 = vdwg.mxu0
        %v692 = vrot.slane %v607, 7
        %v693 = vrot.slane %v611, 7
        %v694 = vrot.slane %v617, 7
        %v695 = vrot.slane %v621, 7
        %v696 = vrot.slane %v627, 7
        %v697 = vrot.slane %v631, 7
        %vm698 = vcmp.lt.s32.totalorder %v370, 1
        %v699 = vsel %vm698, %v696, %v697
        %v700 = vsel %vm698, %v695, %v696
        %v701 = vsel %vm698, %v694, %v695
        %v702 = vsel %vm698, %v693, %v694
        %v703 = vsel %vm698, %v692, %v693
        %v704 = vsel %vm698, %v697, %v692
        %v705 = vadd.f32 %v704, %v609
        %v706 = vadd.f32 %v703, %v613
        %v707 = vadd.f32 %v702, %v619
        %v708 = vadd.f32 %v701, %v623
        %v709 = vadd.f32 %v700, %v629
        %v710 = vadd.f32 %v699, %v633
        %v711 = vrot.slane %v670, 1
        %v712 = vrot.slane %v673, 1
        %v713 = vrot.slane %v678, 1
        %v714 = vrot.slane %v681, 1
        %v715 = vrot.slane %v686, 1
        %v716 = vrot.slane %v689, 1
        %vm717 = vcmp.lt.s32.totalorder %v370, 7
        %v718 = vsel %vm717, %v715, %v716
        %v719 = vsel %vm717, %v714, %v715
        %v720 = vsel %vm717, %v713, %v714
        %v721 = vsel %vm717, %v712, %v713
        %v722 = vsel %vm717, %v711, %v712
        %v723 = vsel %vm717, %v716, %v711
        %v724 = vadd.f32 %v705, %v722
        %v725 = vadd.f32 %v706, %v721
        %v726 = vadd.f32 %v707, %v720
        %v727 = vadd.f32 %v708, %v719
        %v728 = vadd.f32 %v709, %v718
        %v729 = vadd.f32 %v710, %v723
        %v731 = vlaneseq
        %v732 = vshrl.u32 %v731, 7
        %v733 = vsub.s32 0, %v732
        %v734 = vrot.slane %v443, %v733
        %v736 = vadd.f32 %v724, %v734
        %v737 = vadd.f32 %v725, %v734
        %v738 = vadd.f32 %v726, %v734
        %v739 = vadd.f32 %v727, %v734
        %v740 = vadd.f32 %v728, %v734
        %v741 = vadd.f32 %v729, %v734
        %v742 = vmax.f32 %v736, 0.0
        %v743 = vmax.f32 %v737, 0.0
        %v744 = vmax.f32 %v738, 0.0
        %v745 = vmax.f32 %v739, 0.0
        %v746 = vmax.f32 %v740, 0.0
        %v747 = vmax.f32 %v741, 0.0
        %v748 = vsel %vm402, 1, 0
        %v749 = vsel %vm403, 1, 0
        %v750 = vsel %vm404, 1, 0
        %v751 = vsel %vm405, 1, 0
        %v752 = vsel %vm406, 1, 0
        %v753 = vsel %vm407, 1, 0
        %vm754 = vcmp.eq.s32.totalorder %v748, 1
        %vm755 = vcmp.eq.s32.totalorder %v749, 1
        %vm756 = vcmp.eq.s32.totalorder %v750, 1
        %vm757 = vcmp.eq.s32.totalorder %v751, 1
        %vm758 = vcmp.eq.s32.totalorder %v752, 1
        %vm759 = vcmp.eq.s32.totalorder %v753, 1
        %v760 = vsel %vm754, %v742, 0.0
        %v761 = vsel %vm755, %v743, 0.0
        %v762 = vsel %vm756, %v744, 0.0
        %v763 = vsel %vm757, %v745, 0.0
        %v764 = vsel %vm758, %v746, 0.0
        %v765 = vsel %vm759, %v747, 0.0
        %v766 = vpack.c.bf16 %v761, %v760
        %v767 = vpack.c.bf16 %v763, %v762
        %v768 = vpack.c.bf16 %v765, %v764
        %v769 = vld [vmem:[#allocation6] sm:$0xff]
        %v770 = vld [vmem:[#allocation6 + $0x8] sm:$0xf]
        %v771 = vld [vmem:[#allocation6 + $0xc] sm:$0xff]
        %v772 = vld [vmem:[#allocation6 + $0x14] sm:$0xf]
        %v773 = vld [vmem:[#allocation6 + $0x18] sm:$0xff]
        %v774 = vld [vmem:[#allocation6 + $0x20] sm:$0xf]
        %v775 = vld [vmem:[#allocation6 + $0x24] sm:$0xff]
        %v776 = vld [vmem:[#allocation6 + $0x2c] sm:$0xf]
        %v777 = vld [vmem:[#allocation6 + $0x30] sm:$0xff]
        %v778 = vld [vmem:[#allocation6 + $0x38] sm:$0xf]
        %v779 = vld [vmem:[#allocation6 + $0x3c] sm:$0xff]
        %v780 = vld [vmem:[#allocation6 + $0x44] sm:$0xf]
        %v781 = vld [vmem:[#allocation6 + $0x48] sm:$0xff]
        %v782 = vld [vmem:[#allocation6 + $0x50] sm:$0xf]
        %v783 = vld [vmem:[#allocation6 + $0x54] sm:$0xff]
        %v784 = vld [vmem:[#allocation6 + $0x5c] sm:$0xf]
        %v785 = vld [vmem:[#allocation6 + $0x60] sm:$0xff]
        %v786 = vld [vmem:[#allocation6 + $0x68] sm:$0xf]
        %v787 = vld [vmem:[#allocation6 + $0x6c] sm:$0xff]
        %v788 = vld [vmem:[#allocation6 + $0x74] sm:$0xf]
        %v789 = vld [vmem:[#allocation6 + $0x78] sm:$0xff]
        %v790 = vld [vmem:[#allocation6 + $0x80] sm:$0xf]
        %v791 = vld [vmem:[#allocation6 + $0x84] sm:$0xff]
        %v792 = vld [vmem:[#allocation6 + $0x8c] sm:$0xf]
        %v793 = vld [vmem:[#allocation6 + $0x90] sm:$0xff]
        %v794 = vld [vmem:[#allocation6 + $0x98] sm:$0xf]
        %v795 = vld [vmem:[#allocation6 + $0x9c] sm:$0xff]
        %v796 = vld [vmem:[#allocation6 + $0xa4] sm:$0xf]
        %v797 = vld [vmem:[#allocation6 + $0xa8] sm:$0xff]
        %v798 = vld [vmem:[#allocation6 + $0xb0] sm:$0xf]
        %v799 = vld [vmem:[#allocation6 + $0xb4] sm:$0xff]
        %v800 = vld [vmem:[#allocation6 + $0xbc] sm:$0xf]
        %v801 = vld [vmem:[%s4] sm:$0x1]
        %v834 = vunpack.c.l.b16 %v769
        %v835 = vunpack.c.h.b16 %v769
        %v836 = vunpack.c.l.b16 %v770
        %v837 = vunpack.c.l.b16 %v771
        %v838 = vunpack.c.h.b16 %v771
        %v839 = vunpack.c.l.b16 %v772
        %v840 = vunpack.c.l.b16 %v773
        %v841 = vunpack.c.h.b16 %v773
        %v842 = vunpack.c.l.b16 %v774
        %v843 = vunpack.c.l.b16 %v775
        %v844 = vunpack.c.h.b16 %v775
        %v845 = vunpack.c.l.b16 %v776
        %v846 = vunpack.c.l.b16 %v777
        %v847 = vunpack.c.h.b16 %v777
        %v848 = vunpack.c.l.b16 %v778
        %v849 = vunpack.c.l.b16 %v779
        %v850 = vunpack.c.h.b16 %v779
        %v851 = vunpack.c.l.b16 %v780
        %v852 = vunpack.c.l.b16 %v781
        %v853 = vunpack.c.h.b16 %v781
        %v854 = vunpack.c.l.b16 %v782
        %v855 = vunpack.c.l.b16 %v783
        %v856 = vunpack.c.h.b16 %v783
        %v857 = vunpack.c.l.b16 %v784
        %v858 = vunpack.c.l.b16 %v785
        %v859 = vunpack.c.h.b16 %v785
        %v860 = vunpack.c.l.b16 %v786
        %v861 = vunpack.c.l.b16 %v787
        %v862 = vunpack.c.h.b16 %v787
        %v863 = vunpack.c.l.b16 %v788
        %v864 = vunpack.c.l.b16 %v789
        %v865 = vunpack.c.h.b16 %v789
        %v866 = vunpack.c.l.b16 %v790
        %v867 = vunpack.c.l.b16 %v791
        %v868 = vunpack.c.h.b16 %v791
        %v869 = vunpack.c.l.b16 %v792
        %v870 = vunpack.c.l.b16 %v793
        %v871 = vunpack.c.h.b16 %v793
        %v872 = vunpack.c.l.b16 %v794
        %v873 = vunpack.c.l.b16 %v795
        %v874 = vunpack.c.h.b16 %v795
        %v875 = vunpack.c.l.b16 %v796
        %v876 = vunpack.c.l.b16 %v797
        %v877 = vunpack.c.h.b16 %v797
        %v878 = vunpack.c.l.b16 %v798
        %v879 = vunpack.c.l.b16 %v799
        %v880 = vunpack.c.h.b16 %v799
        %v881 = vunpack.c.l.b16 %v800
        %v882 = vpack.c.b16 %v837, %v834
        %v883 = vpack.c.b16 %v838, %v835
        %v884 = vpack.c.b16 %v839, %v836
        %v885 = vpack.c.b16 %v843, %v840
        %v886 = vpack.c.b16 %v844, %v841
        %v887 = vpack.c.b16 %v845, %v842
        %v888 = vpack.c.b16 %v849, %v846
        %v889 = vpack.c.b16 %v850, %v847
        %v890 = vpack.c.b16 %v851, %v848
        %v891 = vpack.c.b16 %v855, %v852
        %v892 = vpack.c.b16 %v856, %v853
        %v893 = vpack.c.b16 %v857, %v854
        %v894 = vpack.c.b16 %v861, %v858
        %v895 = vpack.c.b16 %v862, %v859
        %v896 = vpack.c.b16 %v863, %v860
        %v897 = vpack.c.b16 %v867, %v864
        %v898 = vpack.c.b16 %v868, %v865
        %v899 = vpack.c.b16 %v869, %v866
        %v900 = vpack.c.b16 %v873, %v870
        %v901 = vpack.c.b16 %v874, %v871
        %v902 = vpack.c.b16 %v875, %v872
        %v903 = vpack.c.b16 %v879, %v876
        %v904 = vpack.c.b16 %v880, %v877
        %v905 = vpack.c.b16 %v881, %v878
        %930 = vmatprep.subr.bf16.mxu0 %v883
        %931 = vmatpush1.bf16.msra.mxu0 %v882
        %932 = vmatprep.subr.bf16.mxu0 %v886
        %933 = vmatpush1.bf16.msra.mxu0 %v885
        %934 = vmatprep.subr.bf16.mxu0 %v889
        %935 = vmatpush1.bf16.msra.mxu0 %v888
        %936 = vmatprep.subr.bf16.mxu0 %v892
        %937 = vmatpush1.bf16.msra.mxu0 %v891
        %938 = vmatprep.subr.bf16.mxu0 %v895
        %939 = vmatpush1.bf16.msra.mxu0 %v894
        %940 = vmatprep.subr.bf16.mxu0 %v898
        %941 = vmatpush1.bf16.msra.mxu0 %v897
        %942 = vmatprep.subr.bf16.mxu0 %v901
        %943 = vmatpush1.bf16.msra.mxu0 %v900
        %944 = vmatprep.subr.bf16.mxu0 %v904
        %945 = vmatpush1.bf16.msra.mxu0 %v903
        %946 = vmatprep.subr.bf16.mxu0 0
        %947 = vmatpush1.bf16.msra.mxu0 0
        %948 = vmatprep.subr.bf16.mxu0 0
        %949 = vmatpush1.bf16.msra.mxu0 0
        %950 = vmatprep.subr.bf16.mxu0 0
        %951 = vmatpush1.bf16.msra.mxu0 0
        %952 = vmatprep.subr.bf16.mxu0 0
        %953 = vmatpush1.bf16.msra.mxu0 0
        %954 = vmatprep.subr.bf16.mxu0 0
        %955 = vmatpush1.bf16.msra.mxu0 0
        %956 = vmatprep.subr.bf16.mxu0 0
        %957 = vmatpush1.bf16.msra.mxu0 0
        %958 = vmatprep.subr.bf16.mxu0 0
        %959 = vmatpush1.bf16.msra.mxu0 0
        %960 = vmatprep.subr.bf16.mxu0 0
        %961 = vmatpush1.bf16.msra.mxu0 0
        %962 = vmatprep.mubr.bf16.mxu0 0
        %963 = vmatmul.mubr.bf16.gmra.mrb[0].mxu0 %v766
        %v964 = vpop.f32.mrb[0].mxu0
        %v965 = vadd.f32 0.0, %v964
        %v966 = vpop.f32.mrb[0].mxu0
        %v967 = vpop.f32.mrb[0].mxu0
        %v968 = vadd.f32 0.0, %v967
        %v969 = vpop.f32.mrb[0].mxu0
        %v970 = vadd.f32 0.0, %v969
        %971 = vmatprep.mubr.bf16.mxu0 0
        %972 = vmatmul.mubr.bf16.gmra.mrb[0].mxu0 %v767
        %v973 = vpop.f32.mrb[0].mxu0
        %v974 = vadd.f32 0.0, %v973
        %v975 = vpop.f32.mrb[0].mxu0
        %v976 = vadd.f32 0.0, %v975
        %v977 = vpop.f32.mrb[0].mxu0
        %v978 = vadd.f32 0.0, %v977
        %v979 = vpop.f32.mrb[0].mxu0
        %v980 = vadd.f32 0.0, %v979
        %981 = vmatprep.mubr.bf16.mxu0 0
        %982 = vmatmul.mubr.bf16.gmra.mrb[0].mxu0 %v768
        %v983 = vpop.f32.mrb[0].mxu0
        %v984 = vadd.f32 0.0, %v983
        %v985 = vpop.f32.mrb[0].mxu0
        %v986 = vadd.f32 0.0, %v985
        %v987 = vpop.f32.mrb[0].mxu0
        %v988 = vpop.f32.mrb[0].mxu0
        %989 = vdwg.mxu0
        %990 = vmatprep.subr.bf16.mxu0 0
        %991 = vmatpush1.bf16.msra.mxu0 %v884
        %992 = vmatprep.subr.bf16.mxu0 0
        %993 = vmatpush1.bf16.msra.mxu0 %v887
        %994 = vmatprep.subr.bf16.mxu0 0
        %995 = vmatpush1.bf16.msra.mxu0 %v890
        %996 = vmatprep.subr.bf16.mxu0 0
        %997 = vmatpush1.bf16.msra.mxu0 %v893
        %998 = vmatprep.subr.bf16.mxu0 0
        %999 = vmatpush1.bf16.msra.mxu0 %v896
        %1000 = vmatprep.subr.bf16.mxu0 0
        %1001 = vmatpush1.bf16.msra.mxu0 %v899
        %1002 = vmatprep.subr.bf16.mxu0 0
        %1003 = vmatpush1.bf16.msra.mxu0 %v902
        %1004 = vmatprep.subr.bf16.mxu0 0
        %1005 = vmatpush1.bf16.msra.mxu0 %v905
        %1006 = vmatprep.subr.bf16.mxu0 0
        %1007 = vmatpush1.bf16.msra.mxu0 0
        %1008 = vmatprep.subr.bf16.mxu0 0
        %1009 = vmatpush1.bf16.msra.mxu0 0
        %1010 = vmatprep.subr.bf16.mxu0 0
        %1011 = vmatpush1.bf16.msra.mxu0 0
        %1012 = vmatprep.subr.bf16.mxu0 0
        %1013 = vmatpush1.bf16.msra.mxu0 0
        %1014 = vmatprep.subr.bf16.mxu0 0
        %1015 = vmatpush1.bf16.msra.mxu0 0
        %1016 = vmatprep.subr.bf16.mxu0 0
        %1017 = vmatpush1.bf16.msra.mxu0 0
        %1018 = vmatprep.subr.bf16.mxu0 0
        %1019 = vmatpush1.bf16.msra.mxu0 0
        %1020 = vmatprep.subr.bf16.mxu0 0
        %1021 = vmatpush1.bf16.msra.mxu0 0
        %1022 = vmatprep.mubr.bf16.mxu0 0
        %1023 = vmatmul.mubr.bf16.gmra.mrb[0].mxu0 %v766
        %v1024 = vpop.f32.mrb[0].mxu0
        %v1025 = vpop.f32.mrb[0].mxu0
        %v1026 = vpop.f32.mrb[0].mxu0
        %v1027 = vadd.f32 0.0, %v1026
        %v1028 = vpop.f32.mrb[0].mxu0
        %1029 = vmatprep.mubr.bf16.mxu0 0
        %1030 = vmatmul.mubr.bf16.gmra.mrb[0].mxu0 %v767
        %v1031 = vpop.f32.mrb[0].mxu0
        %v1032 = vadd.f32 0.0, %v1031
        %v1033 = vpop.f32.mrb[0].mxu0
        %v1034 = vpop.f32.mrb[0].mxu0
        %v1035 = vadd.f32 0.0, %v1034
        %v1036 = vpop.f32.mrb[0].mxu0
        %1037 = vmatprep.mubr.bf16.mxu0 0
        %1038 = vmatmul.mubr.bf16.gmra.mrb[0].mxu0 %v768
        %v1039 = vpop.f32.mrb[0].mxu0
        %v1040 = vadd.f32 0.0, %v1039
        %v1041 = vpop.f32.mrb[0].mxu0
        %v1042 = vpop.f32.mrb[0].mxu0
        %v1043 = vadd.f32 0.0, %v1042
        %v1044 = vpop.f32.mrb[0].mxu0
        %1045 = vdwg.mxu0
        %v1046 = vrot.slane %v965, 7
        %v1047 = vrot.slane %v968, 7
        %v1048 = vrot.slane %v974, 7
        %v1049 = vrot.slane %v978, 7
        %v1050 = vrot.slane %v984, 7
        %v1051 = vsel %vm698, %v1049, %v1050
        %v1052 = vsel %vm698, %v1048, %v1049
        %v1053 = vsel %vm698, %v1047, %v1048
        %v1054 = vsel %vm698, %v1046, %v1047
        %v1055 = vadd.f32 %v1054, %v970
        %v1056 = vadd.f32 %v1053, %v976
        %v1057 = vadd.f32 %v1052, %v980
        %v1058 = vadd.f32 %v1051, %v986
        %v1059 = vrot.slane %v1027, 1
        %v1060 = vrot.slane %v1032, 1
        %v1061 = vrot.slane %v1035, 1
        %v1062 = vrot.slane %v1040, 1
        %v1063 = vrot.slane %v1043, 1
        %v1064 = vsel %vm717, %v1062, %v1063
        %v1065 = vsel %vm717, %v1061, %v1062
        %v1066 = vsel %vm717, %v1060, %v1061
        %v1067 = vsel %vm717, %v1059, %v1060
        %v1068 = vadd.f32 %v1055, %v1067
        %v1069 = vadd.f32 %v1056, %v1066
        %v1070 = vadd.f32 %v1057, %v1065
        %v1071 = vadd.f32 %v1058, %v1064
        %v1073 = vlaneseq
        %v1074 = vshrl.u32 %v1073, 7
        %v1075 = vsub.s32 0, %v1074
        %v1076 = vrot.slane %v801, %v1075
        %v1078 = vadd.f32 %v1068, %v1076
        %v1079 = vadd.f32 %v1069, %v1076
        %v1080 = vadd.f32 %v1070, %v1076
        %v1081 = vadd.f32 %v1071, %v1076
        %v1082 = vmax.f32 %v1078, 0.0
        %v1083 = vmax.f32 %v1079, 0.0
        %v1084 = vmax.f32 %v1080, 0.0
        %v1085 = vmax.f32 %v1081, 0.0
        %v1086 = vsel %vm755, %v1082, 0.0
        %v1087 = vsel %vm756, %v1083, 0.0
        %v1088 = vsel %vm757, %v1084, 0.0
        %v1089 = vsel %vm758, %v1085, 0.0
        %1090 = vst [vmem:[%s230] sm:$0xff] %v1086
        %1091 = vst [vmem:[%s230 + $0x8] sm:$0xff] %v1087
        %1092 = vst [vmem:[%s230 + $0x10] sm:$0xff] %v1088
        %1093 = vst [vmem:[%s230 + $0x18] sm:$0xff] %v1089
        %s1094 = smul.u32 4, %s23
        %p1095 = scmp.lt.s32.totalorder %s22, 1
        %s1096 = scalar_select %p1095, %s22, 1
        %p1097 = scmp.lt.s32.totalorder %s1094, 3
        %s1098 = scalar_select %p1097, %s1094, 3
        %s1099 = smul.addr %s1096, 4
        %s1100 = sadd.s32 %s1098, %s1099
        %s1101 = smul.addr %s1100, 8
        %s1102 = scalar_lea.vmem %s5, %s1101
        // Predicated region
        $region121: #{block_forward.1} parent=35 // pred_check
          %p1103 = pneg %p134
        $region122: #{block_forward.1} parent=35 // pred_check_branch
          %1105 = sbr.rel (%p1103) target = $region124
        $region123: #{block_forward.1} parent=35 // pred_region
          %s1106 = smul.u32 4, %s23
        $region124: #{block_forward.1} parent=35 // pred_fallthru
          _
      $region36: #{block_forward.1} parent=5 // pred_fallthru
        _
      %p1107 = scmp.le.s32.totalorder 2, %s13
      // Predicated region
      $region125: #{block_forward.1} parent=5 // pred_check
        %p1108 = pneg %p1107
      $region126: #{block_forward.1} parent=5 // pred_check_branch
        %1110 = sbr.rel (%p1108) target = $region128
      $region127: #{block_forward.1} parent=5 // pred_region
        %s1111 = ssub.s32 %s13, 2
        // Predicated region
        $region129: #{block_forward.1} parent=127 // pred_check
          %p1112 = pneg %p140
        $region130: #{block_forward.1} parent=127 // pred_check_branch
          %1114 = sbr.rel (%p1112) target = $region132
        $region131: #{block_forward.1} parent=127 // pred_region
          %s1115 = smul.u32 4, %s25
          %p1116 = scmp.lt.s32.totalorder %s24, 1
          %s1117 = scalar_select %p1116, %s24, 1
          %p1118 = scmp.lt.s32.totalorder %s1115, 3
          %s1119 = scalar_select %p1118, %s1115, 3
          %s1120 = smul.addr %s1117, 4
          %s1121 = sadd.s32 %s1119, %s1120
          %s1122 = smul.addr %s1121, 8
          %s1123 = scalar_lea.vmem %s5, %s1122
        $region132: #{block_forward.1} parent=127 // pred_fallthru
          _
      $region128: #{block_forward.1} parent=5 // pred_fallthru
        _
    $region6: #{block_forward.1} parent=1 // loop_footer
      %s17 = sadd.s32 1, %s13
    $region7: #{block_forward.1} parent=1 // loop_footer_branch
      %12 = sbr.rel target = $region3
    $region8: #{block_forward.1} parent=1 // loop_exit
      _
    %1124 = vsyncpa [#allocation5], 1
    %s1125 = scalar_lea.sflag [#allocation5], 1
    %1126 = vsyncpa %s1125, 1
    %1127 = vsyncpa [#allocation7], 1
  %1128 = vsyncmov [#allocation3]
  %s1129 = vpop.sfrf %1128
  %p1130 = scmp.eq.s32.totalorder %s1129, 0
  %p1131 = pneg %p1130
  %1133 = shalt.err (%p1131)
  %s1134 = scalar_lea.sflag [#allocation3], 1
  %1135 = vsyncmov %s1134
  %s1136 = vpop.sfrf %1135
  %p1137 = scmp.eq.s32.totalorder %s1136, 0
  %p1138 = pneg %p1137
  %1140 = shalt.err (%p1138)

</llo_original>
